<compile_context>
chip_gen: v7x
topology: tpu7x:2x2x1
jax: 0.10.0
libtpu: 0.0.40
codegen_flags: <defaults>
</compile_context>

<pallas_src>
import functools

import jax
import jax.numpy as jnp
from jax.experimental import pallas as pl
from jax.experimental.pallas import tpu as pltpu


def _round_up(x, m):
    return (x + m - 1) // m * m


def _cdiv(a, b):
    return (a + b - 1) // b


def _stc_block_kernel(x_ref, wem_ref, bem_ref, wd_ref, bd_ref,
                      out_x_ref, out_mask_ref, *, inter):
    # x tile: (1, C, tS) -> (C, tS), kept in io dtype (bf16 feeds the MXU
    # directly; no full-tile f32 upcast held live across the body).
    x = x_ref[0]

    # Fused mask+enc conv: (inter_p, C) @ (C, tS) -> f32 (inter_p, tS).
    # rows [0:inter] = enc output, row [inter] = mask logit, rest = padding.
    hm = jnp.dot(wem_ref[...], x, preferred_element_type=jnp.float32) \
        + bem_ref[...]

    mask = jax.nn.sigmoid(hm[inter:inter + 1, :])                  # (1, tS) f32
    # pSGM stand-in: elementwise gating with the (repeated) mask prediction.
    h = hm[:inter, :] * mask                                       # (inter, tS) f32

    # dec: Conv3d(inter, C, k=1)   (C, inter) @ (inter, tS) -> f32 (C, tS)
    d = jnp.dot(wd_ref[...], h.astype(wd_ref.dtype),
                preferred_element_type=jnp.float32) + bd_ref[...]

    # Residuals: re-read x from VMEM (cheap vld, fully hidden) instead of
    # keeping an f32 copy live since the top of the kernel.
    y = jnp.maximum(d + x_ref[0].astype(jnp.float32), 0.0)         # STCM res+relu
    y = jnp.maximum(y + x_ref[0].astype(jnp.float32), 0.0)         # block res+relu

    out_x_ref[0] = y.astype(out_x_ref.dtype)
    out_mask_ref[0] = mask.astype(out_mask_ref.dtype)


def stc_block_forward(x_ncthw, params, *, max_ts=4096, io_dtype=jnp.float32):
    """x_ncthw: (N, C, T, H, W).  Returns (y, mask) with shapes
    (N, C, T, H, W) and (N, 1, T, H, W), both in io_dtype."""
    N, C, T, H, W = x_ncthw.shape
    inter = params["we"].shape[0]
    inter_p = _round_up(inter + 1, 8)          # enc rows + mask row, 8-aligned
    S = T * H * W
    itemsize = jnp.dtype(io_dtype).itemsize

    # --- spatial tile sizing --------------------------------------------------
    # Per spatial column: double-buffered I/O (x in, y out, mask out) plus the
    # f32 intermediates (hm, d, residual reads) the compiler keeps in VMEM.
    per_col = 2 * (2 * C * itemsize + itemsize) + (inter_p + 3 * C) * 4
    vmem_budget = 40 * 1024 * 1024             # fits v7x (64 MiB) with headroom
    ts_cap = max(128, (vmem_budget // per_col) // 128 * 128)
    cap = min(max_ts, ts_cap)

    # Minimize tail padding: choose tile count first, then round tile to 128.
    s_tiles = _cdiv(S, cap)
    if N == 1 and S > 128:
        s_tiles = max(s_tiles, 2)              # keep >=2 grid steps for megacore
    tS = _round_up(_cdiv(S, s_tiles), 128)
    S_pad = _round_up(S, tS)

    # Free reshape (T,H,W contiguous); no channel transpose anywhere.
    x3d = x_ncthw.reshape(N, C, S).astype(io_dtype)
    if S_pad != S:
        x3d = jnp.pad(x3d, ((0, 0), (0, 0), (0, S_pad - S)))

    # --- fuse mask conv into enc conv (weights + biases) ----------------------
    wem = jnp.zeros((inter_p, C), jnp.float32)
    wem = wem.at[:inter].set(params["we"]).at[inter].set(params["wm"][0])
    bem = jnp.zeros((inter_p, 1), jnp.float32)
    bem = bem.at[:inter].set(params["be"]).at[inter].set(params["bm"][0])
    wem = wem.astype(io_dtype)                 # bf16 MXU operands on bf16 path
    wd = params["wd"].astype(io_dtype)
    bd = params["bd"]                          # biases stay f32 (added post-MXU)

    grid = (N, S_pad // tS)

    kernel = pl.pallas_call(
        functools.partial(_stc_block_kernel, inter=inter),
        out_shape=(
            jax.ShapeDtypeStruct((N, C, S_pad), io_dtype),
            jax.ShapeDtypeStruct((N, 1, S_pad), io_dtype),
        ),
        grid_spec=pltpu.PrefetchScalarGridSpec(
            num_scalar_prefetch=0,
            grid=grid,
            in_specs=[
                pl.BlockSpec((1, C, tS), lambda n, s: (n, 0, s)),     # x tile
                pl.BlockSpec((inter_p, C), lambda n, s: (0, 0)),      # fused w
                pl.BlockSpec((inter_p, 1), lambda n, s: (0, 0)),      # fused b
                pl.BlockSpec((C, inter), lambda n, s: (0, 0)),        # wd
                pl.BlockSpec((C, 1), lambda n, s: (0, 0)),            # bd
            ],
            out_specs=[
                pl.BlockSpec((1, C, tS), lambda n, s: (n, 0, s)),     # y tile
                pl.BlockSpec((1, 1, tS), lambda n, s: (n, 0, s)),     # mask tile
            ],
        ),
        compiler_params=pltpu.CompilerParams(
            dimension_semantics=("parallel", "parallel"),
            vmem_limit_bytes=48 * 1024 * 1024),
    )

    y3d, mask3d = kernel(x3d, wem, bem, wd, bd)

    if S_pad != S:
        y3d = y3d[:, :, :S]
        mask3d = mask3d[:, :, :S]
    y = y3d.reshape(N, C, T, H, W)
    mask = mask3d.reshape(N, 1, T, H, W)
    return y, mask


def init_params(key, feats_dim):
    inter = feats_dim // 4
    k = jax.random.split(key, 6)

    # Conv3d k=1 weights stored as (C_out, C_in) matrices for W @ X matmuls.
    def u(kk, shape, fan_in):
        bound = 1.0 / jnp.sqrt(fan_in)
        return jax.random.uniform(kk, shape, jnp.float32, -bound, bound)

    return {
        "wm": u(k[0], (1, feats_dim), feats_dim),        # mask_layer weight
        "bm": u(k[1], (1, 1), feats_dim),                # mask_layer bias
        "we": u(k[2], (inter, feats_dim), feats_dim),    # STCM.enc
        "be": u(k[3], (inter, 1), feats_dim),
        "wd": u(k[4], (feats_dim, inter), inter),        # STCM.dec
        "bd": u(k[5], (feats_dim, 1), inter),
    }


def _reference(x_ncthw, params):
    """Pure-JAX reference for sanity checking (channels-first throughout)."""
    N, C, T, H, W = x_ncthw.shape
    x = x_ncthw.reshape(N, C, -1).astype(jnp.float32)                 # (N,C,S)
    mask = jax.nn.sigmoid(
        jnp.einsum("oc,ncs->nos", params["wm"], x) + params["bm"][None])
    h = jnp.einsum("oc,ncs->nos", params["we"], x) + params["be"][None]
    h = h * mask
    d = jnp.einsum("co,nos->ncs", params["wd"], h) + params["bd"][None]
    y = jnp.maximum(d + x, 0.0)
    y = jnp.maximum(y + x, 0.0)
    return y.reshape(N, C, T, H, W), mask.reshape(N, 1, T, H, W)


if __name__ == "__main__":
    key = jax.random.PRNGKey(0)
    kx, kp = jax.random.split(key)

    N, C, T, H, W = 2, 32, 4, 8, 8            # feats_dim = 32, inter = 8
    x = jax.random.normal(kx, (N, C, T, H, W), jnp.float32)
    params = init_params(kp, C)
    y_ref, mask_ref = _reference(x, params)

    # ---- f32 I/O path: exact-ish match ----
    y, mask = stc_block_forward(x, params)
    jax.block_until_ready((y, mask))
    assert y.shape == (N, C, T, H, W) and mask.shape == (N, 1, T, H, W)
    assert jnp.allclose(y, y_ref, atol=1e-5, rtol=1e-5)
    assert jnp.allclose(mask, mask_ref, atol=1e-5, rtol=1e-5)

    # ---- bf16 I/O path: halves HBM traffic (memory-bound kernel). Inputs,
    # weights and outputs (including the mask) are bf16, so compare against the
    # f32 reference with bf16-appropriate tolerances.
    y16, mask16 = stc_block_forward(x, params, io_dtype=jnp.bfloat16)
    jax.block_until_ready((y16, mask16))
    assert y16.dtype == jnp.bfloat16 and mask16.dtype == jnp.bfloat16
    assert jnp.allclose(y16.astype(jnp.float32), y_ref, atol=1e-1, rtol=5e-2)
    assert jnp.allclose(mask16.astype(jnp.float32), mask_ref, atol=2e-2, rtol=2e-2)

    # ---- non-multiple spatial size exercises the (minimal) padded-tail path ----
    T2, H2, W2 = 3, 7, 5                       # S = 105, not a multiple of 128
    x2 = jax.random.normal(kx, (N, C, T2, H2, W2), jnp.float32)
    y2, mask2 = stc_block_forward(x2, params)
    jax.block_until_ready((y2, mask2))
    y2_ref, mask2_ref = _reference(x2, params)
    assert jnp.allclose(y2, y2_ref, atol=1e-5, rtol=1e-5)
    assert jnp.allclose(mask2, mask2_ref, atol=1e-5, rtol=1e-5)

    # ---- N=1 path: grid is split along S to keep >=2 parallel steps ----
    x3 = jax.random.normal(kx, (1, C, 2, 16, 16), jnp.float32)   # S = 512
    y3, mask3 = stc_block_forward(x3, params)
    jax.block_until_ready((y3, mask3))
    y3_ref, mask3_ref = _reference(x3, params)
    assert jnp.allclose(y3, y3_ref, atol=1e-5, rtol=1e-5)
    assert jnp.allclose(mask3, mask3_ref, atol=1e-5, rtol=1e-5)

    print("KERNEL_OK")
</pallas_src>

<mosaic_0001>
module attributes {stable_mosaic.version = 11 : i64} {
  func.func @_stc_block_kernel(%arg0: i32, %arg1: i32, %arg2: memref<1x32x256xf32, #tpu.memory_space<vmem>>, %arg3: memref<16x32xf32, #tpu.memory_space<vmem>>, %arg4: memref<16x1xf32, #tpu.memory_space<vmem>>, %arg5: memref<32x8xf32, #tpu.memory_space<vmem>>, %arg6: memref<32x1xf32, #tpu.memory_space<vmem>>, %arg7: memref<1x32x256xf32, #tpu.memory_space<vmem>>, %arg8: memref<1x1x256xf32, #tpu.memory_space<vmem>>) attributes {dimension_semantics = [#tpu.dimension_semantics<parallel>, #tpu.dimension_semantics<parallel>], iteration_bounds = array<i64: 2, 1>, scalar_prefetch = 0 : i64, scratch_operands = 0 : i64, tpu.core_type = #tpu.core_type<tc>, window_params = [{transform_indices = @transform_0, window_bounds = array<i64: 1, 32, 256>}, {pipeline_mode = #tpu.pipeline_mode<synchronous>, transform_indices = @transform_1, window_bounds = array<i64: 16, 32>}, {pipeline_mode = #tpu.pipeline_mode<synchronous>, transform_indices = @transform_2, window_bounds = array<i64: 16, 1>}, {pipeline_mode = #tpu.pipeline_mode<synchronous>, transform_indices = @transform_3, window_bounds = array<i64: 32, 8>}, {pipeline_mode = #tpu.pipeline_mode<synchronous>, transform_indices = @transform_4, window_bounds = array<i64: 32, 1>}, {transform_indices = @transform_5, window_bounds = array<i64: 1, 32, 256>}, {transform_indices = @transform_6, window_bounds = array<i64: 1, 1, 256>}]} {
    %c0 = arith.constant 0 : index
    %c0_0 = arith.constant 0 : index
    %c0_1 = arith.constant 0 : index
    %0 = vector.load %arg2[%c0, %c0_0, %c0_1] : memref<1x32x256xf32, #tpu.memory_space<vmem>>, vector<1x32x256xf32>
    %1 = vector.shape_cast %0 : vector<1x32x256xf32> to vector<32x256xf32>
    %c0_2 = arith.constant 0 : index
    %c0_3 = arith.constant 0 : index
    %2 = vector.load %arg3[%c0_2, %c0_3] : memref<16x32xf32, #tpu.memory_space<vmem>>, vector<16x32xf32>
    %cst = arith.constant dense<0.000000e+00> : vector<16x256xf32>
    %3 = tpu.matmul %2, %1, %cst {dimension_numbers = #tpu.dot_dimension_numbers<[1], [0], [0], [1], [0, 0, 1, 1], [], []>} : vector<16x32xf32>, vector<32x256xf32>, vector<16x256xf32> -> vector<16x256xf32>
    %c0_4 = arith.constant 0 : index
    %c0_5 = arith.constant 0 : index
    %4 = vector.load %arg4[%c0_4, %c0_5] : memref<16x1xf32, #tpu.memory_space<vmem>>, vector<16x1xf32>
    %5 = vector.broadcast %4 : vector<16x1xf32> to vector<16x256xf32>
    %6 = arith.addf %3, %5 : vector<16x256xf32>
    %7 = vector.extract_strided_slice %6 {offsets = [8, 0], sizes = [1, 256], strides = [1, 1]} : vector<16x256xf32> to vector<1x256xf32>
    %8 = arith.negf %7 : vector<1x256xf32>
    %9 = math.exp %8 : vector<1x256xf32>
    %cst_6 = arith.constant 1.000000e+00 : f32
    %10 = vector.broadcast %cst_6 : f32 to vector<1x256xf32>
    %11 = arith.addf %10, %9 : vector<1x256xf32>
    %12 = arith.divf %10, %11 : vector<1x256xf32>
    %13 = vector.extract_strided_slice %6 {offsets = [0, 0], sizes = [8, 256], strides = [1, 1]} : vector<16x256xf32> to vector<8x256xf32>
    %14 = vector.broadcast %12 : vector<1x256xf32> to vector<8x256xf32>
    %15 = arith.mulf %13, %14 : vector<8x256xf32>
    %c0_7 = arith.constant 0 : index
    %c0_8 = arith.constant 0 : index
    %16 = vector.load %arg5[%c0_7, %c0_8] : memref<32x8xf32, #tpu.memory_space<vmem>>, vector<32x8xf32>
    %cst_9 = arith.constant dense<0.000000e+00> : vector<32x256xf32>
    %17 = tpu.matmul %16, %15, %cst_9 {dimension_numbers = #tpu.dot_dimension_numbers<[1], [0], [0], [1], [0, 0, 1, 1], [], []>} : vector<32x8xf32>, vector<8x256xf32>, vector<32x256xf32> -> vector<32x256xf32>
    %c0_10 = arith.constant 0 : index
    %c0_11 = arith.constant 0 : index
    %18 = vector.load %arg6[%c0_10, %c0_11] : memref<32x1xf32, #tpu.memory_space<vmem>>, vector<32x1xf32>
    %19 = vector.broadcast %18 : vector<32x1xf32> to vector<32x256xf32>
    %20 = arith.addf %17, %19 : vector<32x256xf32>
    %c0_12 = arith.constant 0 : index
    %c0_13 = arith.constant 0 : index
    %c0_14 = arith.constant 0 : index
    %21 = vector.load %arg2[%c0_12, %c0_13, %c0_14] : memref<1x32x256xf32, #tpu.memory_space<vmem>>, vector<1x32x256xf32>
    %22 = vector.shape_cast %21 : vector<1x32x256xf32> to vector<32x256xf32>
    %23 = arith.addf %20, %22 : vector<32x256xf32>
    %cst_15 = arith.constant 0.000000e+00 : f32
    %24 = vector.broadcast %cst_15 : f32 to vector<32x256xf32>
    %25 = arith.maximumf %23, %24 : vector<32x256xf32>
    %c0_16 = arith.constant 0 : index
    %c0_17 = arith.constant 0 : index
    %c0_18 = arith.constant 0 : index
    %26 = vector.load %arg2[%c0_16, %c0_17, %c0_18] : memref<1x32x256xf32, #tpu.memory_space<vmem>>, vector<1x32x256xf32>
    %27 = vector.shape_cast %26 : vector<1x32x256xf32> to vector<32x256xf32>
    %28 = arith.addf %25, %27 : vector<32x256xf32>
    %cst_19 = arith.constant 0.000000e+00 : f32
    %29 = vector.broadcast %cst_19 : f32 to vector<32x256xf32>
    %30 = arith.maximumf %28, %29 : vector<32x256xf32>
    %c0_20 = arith.constant 0 : index
    %c0_21 = arith.constant 0 : index
    %c0_22 = arith.constant 0 : index
    %31 = vector.load %arg7[%c0_20, %c0_21, %c0_22] : memref<1x32x256xf32, #tpu.memory_space<vmem>>, vector<1x32x256xf32>
    %32 = vector.shape_cast %31 : vector<1x32x256xf32> to vector<32x256xf32>
    %33 = vector.shape_cast %30 : vector<32x256xf32> to vector<1x32x256xf32>
    tpu.vector_store %arg7[%c0_20, %c0_21, %c0_22], %33 {strides = array<i32>} : memref<1x32x256xf32, #tpu.memory_space<vmem>>, vector<1x32x256xf32>,
    %c0_23 = arith.constant 0 : index
    %c0_24 = arith.constant 0 : index
    %c0_25 = arith.constant 0 : index
    %34 = vector.load %arg8[%c0_23, %c0_24, %c0_25] : memref<1x1x256xf32, #tpu.memory_space<vmem>>, vector<1x1x256xf32>
    %35 = vector.shape_cast %34 : vector<1x1x256xf32> to vector<1x256xf32>
    %36 = vector.shape_cast %12 : vector<1x256xf32> to vector<1x1x256xf32>
    tpu.vector_store %arg8[%c0_23, %c0_24, %c0_25], %36 {strides = array<i32>} : memref<1x1x256xf32, #tpu.memory_space<vmem>>, vector<1x1x256xf32>,
    return
  }
  func.func @transform_0(%arg0: i32, %arg1: i32) -> (i32, i32, i32) {
    %c0_i32 = arith.constant 0 : i32
    %c0_i32_0 = arith.constant 0 : i32
    return %arg0, %c0_i32, %arg1 : i32, i32, i32
  }
  func.func @transform_1(%arg0: i32, %arg1: i32) -> (i32, i32) {
    %c0_i32 = arith.constant 0 : i32
    %c0_i32_0 = arith.constant 0 : i32
    %c0_i32_1 = arith.constant 0 : i32
    return %c0_i32, %c0_i32_0 : i32, i32
  }
  func.func @transform_2(%arg0: i32, %arg1: i32) -> (i32, i32) {
    %c0_i32 = arith.constant 0 : i32
    %c0_i32_0 = arith.constant 0 : i32
    %c0_i32_1 = arith.constant 0 : i32
    return %c0_i32, %c0_i32_0 : i32, i32
  }
  func.func @transform_3(%arg0: i32, %arg1: i32) -> (i32, i32) {
    %c0_i32 = arith.constant 0 : i32
    %c0_i32_0 = arith.constant 0 : i32
    %c0_i32_1 = arith.constant 0 : i32
    return %c0_i32, %c0_i32_0 : i32, i32
  }
  func.func @transform_4(%arg0: i32, %arg1: i32) -> (i32, i32) {
    %c0_i32 = arith.constant 0 : i32
    %c0_i32_0 = arith.constant 0 : i32
    %c0_i32_1 = arith.constant 0 : i32
    return %c0_i32, %c0_i32_0 : i32, i32
  }
  func.func @transform_5(%arg0: i32, %arg1: i32) -> (i32, i32, i32) {
    %c0_i32 = arith.constant 0 : i32
    %c0_i32_0 = arith.constant 0 : i32
    return %arg0, %c0_i32, %arg1 : i32, i32, i32
  }
  func.func @transform_6(%arg0: i32, %arg1: i32) -> (i32, i32, i32) {
    %c0_i32 = arith.constant 0 : i32
    %c0_i32_0 = arith.constant 0 : i32
    return %arg0, %c0_i32, %arg1 : i32, i32, i32
  }
}

</mosaic_0001>

<llo_original>
// kernel: tpu_custom_call.1
$region0: #{tpu_custom_call.1}
  #allocation0 [shape = 'u32[]', space=smem, size = 0x4, offset = 0x4, fixed_abs, tag = 'smem constant byte address 0x4 - core index']
  #allocation1 [shape = 'u32[144,128]{1,0:T(1,128)}', space=vmem, size = 0x12000, scoped, tag = 'internal scratch']
  %s0 = inlined_call_operand.hbm [shape: f32[2,32,256], index: 0, kind: input, shape index: {}]
  %s1 = inlined_call_operand.vmem [shape: f32[16,32], index: 1, kind: input, shape index: {}]
  %s2 = inlined_call_operand.vmem [shape: f32[16,1], index: 2, kind: input, shape index: {}]
  %s3 = inlined_call_operand.vmem [shape: f32[32,8], index: 3, kind: input, shape index: {}]
  %s4 = inlined_call_operand.vmem [shape: f32[32,1], index: 4, kind: input, shape index: {}]
  %s5 = inlined_call_operand.hbm [shape: f32[2,32,256], index: 5, kind: output, shape index: {0}]
  %s6 = inlined_call_operand.hbm [shape: f32[2,1,256], index: 6, kind: output, shape index: {1}]
  %7 = xla_tuple %s5, %s6
  %s8 = sld [smem:[#allocation0]]
  $region65: #{tpu_custom_call.1} parent=0
    _
  %s10 = ssub.s32 1, %s8
  %s11 = scalar_select 0, %s10, %s8
  $region1: #{tpu_custom_call.1} parent=0
    #allocation2 [shape = 'u8[65536]{0}', space=vmem, size = 0x10000, scoped, tag = 'input window, operand 0']
    #allocation3 [shape = 's32[2]{0}', space=sflag, size = 0x8, scoped, tag = 'scoped memory for tpu_custom_call.1']
    #allocation4 [shape = 's32[2]{0}', space=sflag, size = 0x8, scoped, tag = 'scoped memory for tpu_custom_call.1']
    #allocation5 [shape = 'u8[65536]{0}', space=vmem, size = 0x10000, scoped, tag = 'output window, operand 0']
    #allocation6 [shape = 'u8[2048]{0}', space=vmem, size = 0x800, scoped, tag = 'output window, operand 1']
    #allocation7 [shape = 's32[2]{0}', space=sflag, size = 0x8, scoped, tag = 'scoped memory for tpu_custom_call.1']
    %12 = vsyncpa [#allocation3], 0
    %s13 = scalar_lea.sflag [#allocation3], 1
    %14 = vsyncpa %s13, 0
    %15 = vsyncpa [#allocation4], 0
    %s16 = scalar_lea.sflag [#allocation4], 1
    %17 = vsyncpa %s16, 0
    %18 = vsyncpa [#allocation7], 0
    %s19 = scalar_lea.sflag [#allocation7], 1
    %20 = vsyncpa %s19, 0
    loop: start=0, step=1, limit=4
    $region2: #{tpu_custom_call.1} parent=1 // loop_pre_header
      _
    $region3: #{tpu_custom_call.1} parent=1 // loop_header
      %s22 = sphi 0, %s26
      %p23 = scmp.ge.s32.totalorder %s22, 4
      %s29 = sphi 0, %s41
      %s30 = sphi 0, %s37
      %s31 = sphi 0, %s29
      %s32 = sphi 0, %s30
      %s33 = sphi 0, %s31
      %s34 = sphi 0, %s32
      %s46 = sphi 0, %s48
      %s49 = sphi 0, %s46
      %s50 = sphi 0, %s49
      %s66 = sphi 0, %s50
      %s70 = sphi 0, %s70
      %s72 = sphi 0, %s70
      %s73 = sphi 0, %s72
      %s87 = sphi 0, %s73
      %s91 = sphi 0, %s91
      %s93 = sphi 0, %s91
      %s94 = sphi 0, %s93
      %s108 = sphi 0, %s94
      %s112 = sphi 0, %s112
      %s114 = sphi 0, %s112
      %s115 = sphi 0, %s114
      %s129 = sphi 0, %s115
      %s133 = sphi 0, %s133
      %s135 = sphi 0, %s133
      %s136 = sphi 0, %s135
      %s150 = sphi 0, %s136
      %s158 = sphi 0, %s160
      %s161 = sphi 0, %s158
      %s162 = sphi 0, %s161
      %s178 = sphi 0, %s162
      %s186 = sphi 0, %s188
      %s189 = sphi 0, %s186
      %s190 = sphi 0, %s189
      %s206 = sphi 0, %s190
    $region4: #{tpu_custom_call.1} parent=1 // loop_header_branch
      %25 = sbr.rel (%p23) target = $region8
    $region5: #{tpu_custom_call.1} parent=1 // loop_body
      %s27 = ssub.s32 %s22, 1
      %s28 = ssub.s32 %s22, 2
      %s35 = sadd.s32 1, %s30
      %p36 = scmp.ge.s32.totalorder %s35, 1
      %s37 = scalar_select %p36, 0, %s35
      %s38 = sadd.s32 1, %s29
      %s39 = scalar_select %p36, %s38, %s29
      %p40 = scmp.ge.s32.totalorder %s39, 2
      %s41 = scalar_select %p40, 0, %s39
      %s42 = ssub.s32 %s29, %s41
      %s43 = ssub.s32 %s30, %s37
      %s44 = sor.u32 %s42, %s43
      %p45 = scmp.eq.s32.totalorder %s44, 0
      %s47 = sadd.s32 %s46, 1
      %s48 = scalar_select %p45, %s46, %s47
      %p51 = pneg %p45
      %p52 = scmp.eq.s32.totalorder %s22, 1
      %p53 = por %p51, %p52
      %p54 = scmp.ne.s32.totalorder %s46, %s49
      %p55 = scmp.eq.s32.totalorder %s22, 0
      %p56 = por %p54, %p55
      %p57 = scmp.ne.s32.totalorder %s46, %s49
      %p58 = scmp.eq.s32.totalorder %s27, 1
      %p59 = por %p57, %p58
      %p60 = scmp.ne.s32.totalorder %s49, %s50
      %p61 = scmp.eq.s32.totalorder %s27, 0
      %p62 = por %p60, %p61
      %p63 = scmp.ne.s32.totalorder %s49, %s50
      %p64 = scmp.eq.s32.totalorder %s28, 1
      %p65 = por %p63, %p64
      %p67 = scmp.ne.s32.totalorder %s50, %s66
      %p68 = scmp.eq.s32.totalorder %s28, 0
      %p69 = por %p67, %p68
      %s71 = sadd.s32 %s70, 1
      %p74 = scmp.eq.s32.totalorder %s22, 1
      %p75 = scmp.ne.s32.totalorder %s70, %s72
      %p76 = scmp.eq.s32.totalorder %s22, 0
      %p77 = por %p75, %p76
      %p78 = scmp.ne.s32.totalorder %s70, %s72
      %p79 = scmp.eq.s32.totalorder %s27, 1
      %p80 = por %p78, %p79
      %p81 = scmp.ne.s32.totalorder %s72, %s73
      %p82 = scmp.eq.s32.totalorder %s27, 0
      %p83 = por %p81, %p82
      %p84 = scmp.ne.s32.totalorder %s72, %s73
      %p85 = scmp.eq.s32.totalorder %s28, 1
      %p86 = por %p84, %p85
      %p88 = scmp.ne.s32.totalorder %s73, %s87
      %p89 = scmp.eq.s32.totalorder %s28, 0
      %p90 = por %p88, %p89
      %s92 = sadd.s32 %s91, 1
      %p95 = scmp.eq.s32.totalorder %s22, 1
      %p96 = scmp.ne.s32.totalorder %s91, %s93
      %p97 = scmp.eq.s32.totalorder %s22, 0
      %p98 = por %p96, %p97
      %p99 = scmp.ne.s32.totalorder %s91, %s93
      %p100 = scmp.eq.s32.totalorder %s27, 1
      %p101 = por %p99, %p100
      %p102 = scmp.ne.s32.totalorder %s93, %s94
      %p103 = scmp.eq.s32.totalorder %s27, 0
      %p104 = por %p102, %p103
      %p105 = scmp.ne.s32.totalorder %s93, %s94
      %p106 = scmp.eq.s32.totalorder %s28, 1
      %p107 = por %p105, %p106
      %p109 = scmp.ne.s32.totalorder %s94, %s108
      %p110 = scmp.eq.s32.totalorder %s28, 0
      %p111 = por %p109, %p110
      %s113 = sadd.s32 %s112, 1
      %p116 = scmp.eq.s32.totalorder %s22, 1
      %p117 = scmp.ne.s32.totalorder %s112, %s114
      %p118 = scmp.eq.s32.totalorder %s22, 0
      %p119 = por %p117, %p118
      %p120 = scmp.ne.s32.totalorder %s112, %s114
      %p121 = scmp.eq.s32.totalorder %s27, 1
      %p122 = por %p120, %p121
      %p123 = scmp.ne.s32.totalorder %s114, %s115
      %p124 = scmp.eq.s32.totalorder %s27, 0
      %p125 = por %p123, %p124
      %p126 = scmp.ne.s32.totalorder %s114, %s115
      %p127 = scmp.eq.s32.totalorder %s28, 1
      %p128 = por %p126, %p127
      %p130 = scmp.ne.s32.totalorder %s115, %s129
      %p131 = scmp.eq.s32.totalorder %s28, 0
      %p132 = por %p130, %p131
      %s134 = sadd.s32 %s133, 1
      %p137 = scmp.eq.s32.totalorder %s22, 1
      %p138 = scmp.ne.s32.totalorder %s133, %s135
      %p139 = scmp.eq.s32.totalorder %s22, 0
      %p140 = por %p138, %p139
      %p141 = scmp.ne.s32.totalorder %s133, %s135
      %p142 = scmp.eq.s32.totalorder %s27, 1
      %p143 = por %p141, %p142
      %p144 = scmp.ne.s32.totalorder %s135, %s136
      %p145 = scmp.eq.s32.totalorder %s27, 0
      %p146 = por %p144, %p145
      %p147 = scmp.ne.s32.totalorder %s135, %s136
      %p148 = scmp.eq.s32.totalorder %s28, 1
      %p149 = por %p147, %p148
      %p151 = scmp.ne.s32.totalorder %s136, %s150
      %p152 = scmp.eq.s32.totalorder %s28, 0
      %p153 = por %p151, %p152
      %s154 = ssub.s32 %s29, %s41
      %s155 = ssub.s32 %s30, %s37
      %s156 = sor.u32 %s154, %s155
      %p157 = scmp.eq.s32.totalorder %s156, 0
      %s159 = sadd.s32 %s158, 1
      %s160 = scalar_select %p157, %s158, %s159
      %p163 = pneg %p157
      %p164 = scmp.eq.s32.totalorder %s22, 1
      %p165 = por %p163, %p164
      %p166 = scmp.ne.s32.totalorder %s158, %s161
      %p167 = scmp.eq.s32.totalorder %s22, 0
      %p168 = por %p166, %p167
      %p169 = scmp.ne.s32.totalorder %s158, %s161
      %p170 = scmp.eq.s32.totalorder %s27, 1
      %p171 = por %p169, %p170
      %p172 = scmp.ne.s32.totalorder %s161, %s162
      %p173 = scmp.eq.s32.totalorder %s27, 0
      %p174 = por %p172, %p173
      %p175 = scmp.ne.s32.totalorder %s161, %s162
      %p176 = scmp.eq.s32.totalorder %s28, 1
      %p177 = por %p175, %p176
      %p179 = scmp.ne.s32.totalorder %s162, %s178
      %p180 = scmp.eq.s32.totalorder %s28, 0
      %p181 = por %p179, %p180
      %s182 = ssub.s32 %s29, %s41
      %s183 = ssub.s32 %s30, %s37
      %s184 = sor.u32 %s182, %s183
      %p185 = scmp.eq.s32.totalorder %s184, 0
      %s187 = sadd.s32 %s186, 1
      %s188 = scalar_select %p185, %s186, %s187
      %p191 = pneg %p185
      %p192 = scmp.eq.s32.totalorder %s22, 1
      %p193 = por %p191, %p192
      %p194 = scmp.ne.s32.totalorder %s186, %s189
      %p195 = scmp.eq.s32.totalorder %s22, 0
      %p196 = por %p194, %p195
      %p197 = scmp.ne.s32.totalorder %s186, %s189
      %p198 = scmp.eq.s32.totalorder %s27, 1
      %p199 = por %p197, %p198
      %p200 = scmp.ne.s32.totalorder %s189, %s190
      %p201 = scmp.eq.s32.totalorder %s27, 0
      %p202 = por %p200, %p201
      %p203 = scmp.ne.s32.totalorder %s189, %s190
      %p204 = scmp.eq.s32.totalorder %s28, 1
      %p205 = por %p203, %p204
      %p207 = scmp.ne.s32.totalorder %s190, %s206
      %p208 = scmp.eq.s32.totalorder %s28, 0
      %p209 = por %p207, %p208
      %p210 = scmp.le.s32.totalorder 1, %s22
      %p211 = scmp.lt.s32.totalorder %s22, 3
      %p212 = pnand %p210, %p211
      %p213 = pneg %p212
      // Predicated region
      $region9: #{tpu_custom_call.1} parent=5 // pred_check
        _
      $region10: #{tpu_custom_call.1} parent=5 // pred_check_branch
        %215 = sbr.rel (%p212) target = $region12
      $region11: #{tpu_custom_call.1} parent=5 // pred_region
        %s216 = ssub.s32 %s22, 1
        // Predicated region
        $region13: #{tpu_custom_call.1} parent=11 // pred_check
          %p217 = pneg %p83
        $region14: #{tpu_custom_call.1} parent=11 // pred_check_branch
          %219 = sbr.rel (%p217) target = $region16
        $region15: #{tpu_custom_call.1} parent=11 // pred_region
          _
        $region16: #{tpu_custom_call.1} parent=11 // pred_fallthru
          _
        // Predicated region
        $region17: #{tpu_custom_call.1} parent=11 // pred_check
          %p220 = pneg %p104
        $region18: #{tpu_custom_call.1} parent=11 // pred_check_branch
          %222 = sbr.rel (%p220) target = $region20
        $region19: #{tpu_custom_call.1} parent=11 // pred_region
          _
        $region20: #{tpu_custom_call.1} parent=11 // pred_fallthru
          _
        // Predicated region
        $region21: #{tpu_custom_call.1} parent=11 // pred_check
          %p223 = pneg %p125
        $region22: #{tpu_custom_call.1} parent=11 // pred_check_branch
          %225 = sbr.rel (%p223) target = $region24
        $region23: #{tpu_custom_call.1} parent=11 // pred_region
          _
        $region24: #{tpu_custom_call.1} parent=11 // pred_fallthru
          _
        // Predicated region
        $region25: #{tpu_custom_call.1} parent=11 // pred_check
          %p226 = pneg %p146
        $region26: #{tpu_custom_call.1} parent=11 // pred_check_branch
          %228 = sbr.rel (%p226) target = $region28
        $region27: #{tpu_custom_call.1} parent=11 // pred_region
          _
        $region28: #{tpu_custom_call.1} parent=11 // pred_fallthru
          _
      $region12: #{tpu_custom_call.1} parent=5 // pred_fallthru
        _
      %p229 = scmp.lt.s32.totalorder %s22, 2
      // Predicated region
      $region29: #{tpu_custom_call.1} parent=5 // pred_check
        %p230 = pneg %p229
      $region30: #{tpu_custom_call.1} parent=5 // pred_check_branch
        %232 = sbr.rel (%p230) target = $region32
      $region31: #{tpu_custom_call.1} parent=5 // pred_region
        // Predicated region
        $region33: #{tpu_custom_call.1} parent=31 // pred_check
          %p233 = pneg %p56
        $region34: #{tpu_custom_call.1} parent=31 // pred_check_branch
          %235 = sbr.rel (%p233) target = $region36
        $region35: #{tpu_custom_call.1} parent=31 // pred_region
          %s236 = sand.u32 %s46, 1
          %s237 = scalar_lea.sflag [#allocation3], %s236
          %s238 = sand.u32 %s46, 1
          %s239 = smul.addr %s238, 64
          %s240 = scalar_lea.vmem [#allocation2], %s239
          %s241 = smul.u32 2, %s30
          %s243 = ssub.s32 1024, 1024
          %244 = vsyncadd %s237, %s243
          %s245 = smul.addr %s29, 8
          %s246 = sadd.s32 %s241, %s245
          %s247 = smul.addr %s246, 128
          %s248 = scalar_lea.hbm %s0, %s247
          %s249 = sshll.u32 %s240, 4
          %s250 = int_to_ptr.vmem [resolvable:$true] %s249
          %255 = dma.hbm_to_vmem [thread:$0]  %s248, 1024, %s250, %s237, 256, 256, 16
        $region36: #{tpu_custom_call.1} parent=31 // pred_fallthru
          _
      $region32: #{tpu_custom_call.1} parent=5 // pred_fallthru
        _
      %p256 = scmp.le.s32.totalorder 1, %s22
      %p257 = scmp.lt.s32.totalorder %s22, 3
      %p258 = pnand %p256, %p257
      %p259 = pneg %p258
      // Predicated region
      $region37: #{tpu_custom_call.1} parent=5 // pred_check
        _
      $region38: #{tpu_custom_call.1} parent=5 // pred_check_branch
        %261 = sbr.rel (%p258) target = $region40
      $region39: #{tpu_custom_call.1} parent=5 // pred_region
        %s262 = ssub.s32 %s22, 1
        %s263 = sand.u32 %s49, 1
        %s264 = scalar_lea.sflag [#allocation3], %s263
        %s265 = sand.u32 %s49, 1
        %s266 = smul.addr %s265, 64
        %s267 = scalar_lea.vmem [#allocation2], %s266
        // Predicated region
        $region41: #{tpu_custom_call.1} parent=39 // pred_check
          %p268 = pneg %p62
        $region42: #{tpu_custom_call.1} parent=39 // pred_check_branch
          %270 = sbr.rel (%p268) target = $region44
        $region43: #{tpu_custom_call.1} parent=39 // pred_region
          %271 = dma.done %s264, 1024
        $region44: #{tpu_custom_call.1} parent=39 // pred_fallthru
          _
        %s272 = sand.u32 %s49, 1
        %s273 = scalar_lea.sflag [#allocation3], %s272
        %s274 = sand.u32 %s49, 1
        %s275 = smul.addr %s274, 64
        %s276 = scalar_lea.vmem [#allocation2], %s275
        %p277 = pneg %p62
        %p278 = pneg %p59
        %p279 = pneg %p83
        %p280 = pneg %p80
        %p281 = pneg %p104
        %p282 = pneg %p101
        %p283 = pneg %p125
        %p284 = pneg %p122
        %p285 = pneg %p146
        %p286 = pneg %p143
        %p287 = pneg %p174
        %p288 = pneg %p171
        %s289 = sand.u32 %s161, 1
        %s290 = scalar_lea.sflag [#allocation4], %s289
        %s291 = sand.u32 %s161, 1
        %s292 = smul.addr %s291, 64
        %s293 = scalar_lea.vmem [#allocation5], %s292
        %p294 = pneg %p202
        %p295 = pneg %p199
        %s296 = sand.u32 %s189, 1
        %s297 = scalar_lea.sflag [#allocation7], %s296
        %s298 = sand.u32 %s189, 1
        %s299 = smul.addr %s298, 2
        %s300 = scalar_lea.vmem [#allocation6], %s299
        %s301 = smul.u32 2, %s32
        %s302 = smul.u32 2, %s32
        %s303 = smul.u32 2, %s32
        %v304 = vld [vmem:[%s267] sm:$0xff]
        %v305 = vld [vmem:[%s267 + $0x8] sm:$0xff]
        %v306 = vld [vmem:[%s267 + $0x10] sm:$0xff]
        %v307 = vld [vmem:[%s267 + $0x18] sm:$0xff]
        %v308 = vld [vmem:[%s267 + $0x20] sm:$0xff]
        %v309 = vld [vmem:[%s267 + $0x28] sm:$0xff]
        %v310 = vld [vmem:[%s267 + $0x30] sm:$0xff]
        %v311 = vld [vmem:[%s267 + $0x38] sm:$0xff]
        %v312 = vld [vmem:[%s1] sm:$0xff]
        %v313 = vld [vmem:[%s1 + $0x8] sm:$0xff]
        %v314 = vld [vmem:[%s2] sm:$0xff]
        %v315 = vld [vmem:[%s2 + $0x8] sm:$0xff]
        %317 = vset.pattern.permute.xlu0 0
        %318 = vperm.xlu0 %317, %v314
        %v319 = vpop.permute.xlu0 %318
        %322 = vset.pattern.permute.xlu0 0
        %323 = vperm.xlu0 %322, %v315
        %v324 = vpop.permute.xlu0 %323
        %vm326 = vcmask 261120
        %v328 = vsel %vm326, %v312, 0
        %v331 = vsel %vm326, %v313, 0
        %333 = vmatprep.subr.mxu0 %v305
        %334 = vmatpush1.msra.mxu0 %v304
        %335 = vmatprep.subr.mxu0 %v307
        %336 = vmatpush1.msra.mxu0 %v306
        %337 = vmatprep.subr.mxu0 %v309
        %338 = vmatpush1.msra.mxu0 %v308
        %339 = vmatprep.subr.mxu0 %v311
        %340 = vmatpush1.msra.mxu0 %v310
        %341 = vmatprep.subr.mxu0 0.0
        %342 = vmatpush1.msra.mxu0 0.0
        %343 = vmatprep.subr.mxu0 0.0
        %344 = vmatpush1.msra.mxu0 0.0
        %345 = vmatprep.subr.mxu0 0.0
        %346 = vmatpush1.msra.mxu0 0.0
        %347 = vmatprep.subr.mxu0 0.0
        %348 = vmatpush1.msra.mxu0 0.0
        %349 = vmatprep.subr.mxu0 0.0
        %350 = vmatpush1.msra.mxu0 0.0
        %351 = vmatprep.subr.mxu0 0.0
        %352 = vmatpush1.msra.mxu0 0.0
        %353 = vmatprep.subr.mxu0 0.0
        %354 = vmatpush1.msra.mxu0 0.0
        %355 = vmatprep.subr.mxu0 0.0
        %356 = vmatpush1.msra.mxu0 0.0
        %357 = vmatprep.subr.mxu0 0.0
        %358 = vmatpush1.msra.mxu0 0.0
        %359 = vmatprep.subr.mxu0 0.0
        %360 = vmatpush1.msra.mxu0 0.0
        %361 = vmatprep.subr.mxu0 0.0
        %362 = vmatpush1.msra.mxu0 0.0
        %363 = vmatprep.subr.mxu0 0.0
        %364 = vmatpush1.msra.mxu0 0.0
        %365 = vmatprep.subr.mxu0 0.0
        %366 = vmatpush1.msra.mxu0 0.0
        %367 = vmatprep.subr.mxu0 0.0
        %368 = vmatpush1.msra.mxu0 0.0
        %369 = vmatprep.subr.mxu0 0.0
        %370 = vmatpush1.msra.mxu0 0.0
        %371 = vmatprep.subr.mxu0 0.0
        %372 = vmatpush1.msra.mxu0 0.0
        %373 = vmatprep.subr.mxu0 0.0
        %374 = vmatpush1.msra.mxu0 0.0
        %375 = vmatprep.subr.mxu0 0.0
        %376 = vmatpush1.msra.mxu0 0.0
        %377 = vmatprep.subr.mxu0 0.0
        %378 = vmatpush1.msra.mxu0 0.0
        %379 = vmatprep.subr.mxu0 0.0
        %380 = vmatpush1.msra.mxu0 0.0
        %381 = vmatprep.subr.mxu0 0.0
        %382 = vmatpush1.msra.mxu0 0.0
        %383 = vmatprep.subr.mxu0 0.0
        %384 = vmatpush1.msra.mxu0 0.0
        %385 = vmatprep.subr.mxu0 0.0
        %386 = vmatpush1.msra.mxu0 0.0
        %387 = vmatprep.subr.mxu0 0.0
        %388 = vmatpush1.msra.mxu0 0.0
        %389 = vmatprep.subr.mxu0 0.0
        %390 = vmatpush1.msra.mxu0 0.0
        %391 = vmatprep.subr.mxu0 0.0
        %392 = vmatpush1.msra.mxu0 0.0
        %393 = vmatprep.subr.mxu0 0.0
        %394 = vmatpush1.msra.mxu0 0.0
        %395 = vmatprep.subr.mxu0 0.0
        %396 = vmatpush1.msra.mxu0 0.0
        %397 = vmatprep.mubr.f32.mxu0 0.0
        %398 = vmatmul.mubr.f32.gmra.mrb[0].mxu0 %v328
        %v399 = vpop.f32.mrb[0].mxu0
        %v400 = vadd.f32 %v319, %v399
        %v401 = vpop.f32.mrb[0].mxu0
        %v402 = vadd.f32 %v319, %v401
        %403 = vmatprep.mubr.f32.mxu0 0.0
        %404 = vmatmul.mubr.f32.gmra.mrb[0].mxu0 %v331
        %v405 = vpop.f32.mrb[0].mxu0
        %v406 = vadd.f32 %v324, %v405
        %v407 = vpop.f32.mrb[0].mxu0
        %v408 = vadd.f32 %v324, %v407
        %409 = vdwg.mxu0
        %v410 = vxor.u32 %v406, 2147483648
        %v411 = vxor.u32 %v408, 2147483648
        %v412 = vmul.f32 %v410, 1.442695
        %v413 = vpow.pop %v412
        %v414 = vmul.f32 %v411, 1.442695
        %v415 = vpow.pop %v414
        %v416 = vadd.f32 %v413, 1.0
        %v417 = vadd.f32 %v415, 1.0
        %v418 = vrcp.pop %v416
        %v419 = vmul.f32 1.0, %v418
        %v420 = vrcp.pop %v417
        %v421 = vmul.f32 1.0, %v420
        %v422 = vlaneseq
        %v423 = vshrl.u32 %v422, 7
        %v424 = vsub.s32 0, %v423
        %v425 = vrot.slane %v419, %v424
        %v426 = vlaneseq
        %v427 = vshrl.u32 %v426, 7
        %v428 = vsub.s32 0, %v427
        %v429 = vrot.slane %v421, %v428
        %v430 = vmul.f32 %v400, %v425
        %v431 = vmul.f32 %v402, %v429
        %v432 = vld [vmem:[%s3] sm:$0xff]
        %v433 = vld [vmem:[%s3 + $0x8] sm:$0xff]
        %v434 = vld [vmem:[%s3 + $0x10] sm:$0xff]
        %v435 = vld [vmem:[%s3 + $0x18] sm:$0xff]
        %v436 = vld [vmem:[%s4] sm:$0xff]
        %v437 = vld [vmem:[%s4 + $0x8] sm:$0xff]
        %v438 = vld [vmem:[%s4 + $0x10] sm:$0xff]
        %v439 = vld [vmem:[%s4 + $0x18] sm:$0xff]
        %441 = vset.pattern.permute.xlu0 0
        %442 = vperm.xlu0 %441, %v436
        %v443 = vpop.permute.xlu0 %442
        %446 = vset.pattern.permute.xlu0 0
        %447 = vperm.xlu0 %446, %v437
        %v448 = vpop.permute.xlu0 %447
        %451 = vset.pattern.permute.xlu0 0
        %452 = vperm.xlu0 %451, %v438
        %v453 = vpop.permute.xlu0 %452
        %456 = vset.pattern.permute.xlu0 0
        %457 = vperm.xlu0 %456, %v439
        %v458 = vpop.permute.xlu0 %457
        %vm460 = vcmask 64512
        %v462 = vsel %vm460, %v432, 0
        %v465 = vsel %vm460, %v433, 0
        %v468 = vsel %vm460, %v434, 0
        %v471 = vsel %vm460, %v435, 0
        %473 = vmatprep.subr.mxu0 %v431
        %474 = vmatpush1.msra.mxu0 %v430
        %475 = vmatprep.subr.mxu0 0.0
        %476 = vmatpush1.msra.mxu0 0.0
        %477 = vmatprep.subr.mxu0 0.0
        %478 = vmatpush1.msra.mxu0 0.0
        %479 = vmatprep.subr.mxu0 0.0
        %480 = vmatpush1.msra.mxu0 0.0
        %481 = vmatprep.subr.mxu0 0.0
        %482 = vmatpush1.msra.mxu0 0.0
        %483 = vmatprep.subr.mxu0 0.0
        %484 = vmatpush1.msra.mxu0 0.0
        %485 = vmatprep.subr.mxu0 0.0
        %486 = vmatpush1.msra.mxu0 0.0
        %487 = vmatprep.subr.mxu0 0.0
        %488 = vmatpush1.msra.mxu0 0.0
        %489 = vmatprep.subr.mxu0 0.0
        %490 = vmatpush1.msra.mxu0 0.0
        %491 = vmatprep.subr.mxu0 0.0
        %492 = vmatpush1.msra.mxu0 0.0
        %493 = vmatprep.subr.mxu0 0.0
        %494 = vmatpush1.msra.mxu0 0.0
        %495 = vmatprep.subr.mxu0 0.0
        %496 = vmatpush1.msra.mxu0 0.0
        %497 = vmatprep.subr.mxu0 0.0
        %498 = vmatpush1.msra.mxu0 0.0
        %499 = vmatprep.subr.mxu0 0.0
        %500 = vmatpush1.msra.mxu0 0.0
        %501 = vmatprep.subr.mxu0 0.0
        %502 = vmatpush1.msra.mxu0 0.0
        %503 = vmatprep.subr.mxu0 0.0
        %504 = vmatpush1.msra.mxu0 0.0
        %505 = vmatprep.subr.mxu0 0.0
        %506 = vmatpush1.msra.mxu0 0.0
        %507 = vmatprep.subr.mxu0 0.0
        %508 = vmatpush1.msra.mxu0 0.0
        %509 = vmatprep.subr.mxu0 0.0
        %510 = vmatpush1.msra.mxu0 0.0
        %511 = vmatprep.subr.mxu0 0.0
        %512 = vmatpush1.msra.mxu0 0.0
        %513 = vmatprep.subr.mxu0 0.0
        %514 = vmatpush1.msra.mxu0 0.0
        %515 = vmatprep.subr.mxu0 0.0
        %516 = vmatpush1.msra.mxu0 0.0
        %517 = vmatprep.subr.mxu0 0.0
        %518 = vmatpush1.msra.mxu0 0.0
        %519 = vmatprep.subr.mxu0 0.0
        %520 = vmatpush1.msra.mxu0 0.0
        %521 = vmatprep.subr.mxu0 0.0
        %522 = vmatpush1.msra.mxu0 0.0
        %523 = vmatprep.subr.mxu0 0.0
        %524 = vmatpush1.msra.mxu0 0.0
        %525 = vmatprep.subr.mxu0 0.0
        %526 = vmatpush1.msra.mxu0 0.0
        %527 = vmatprep.subr.mxu0 0.0
        %528 = vmatpush1.msra.mxu0 0.0
        %529 = vmatprep.subr.mxu0 0.0
        %530 = vmatpush1.msra.mxu0 0.0
        %531 = vmatprep.subr.mxu0 0.0
        %532 = vmatpush1.msra.mxu0 0.0
        %533 = vmatprep.subr.mxu0 0.0
        %534 = vmatpush1.msra.mxu0 0.0
        %535 = vmatprep.subr.mxu0 0.0
        %536 = vmatpush1.msra.mxu0 0.0
        %537 = vmatprep.mubr.f32.mxu0 0.0
        %538 = vmatmul.mubr.f32.gmra.mrb[0].mxu0 %v462
        %v539 = vpop.f32.mrb[0].mxu0
        %v540 = vadd.f32 %v443, %v539
        %v541 = vpop.f32.mrb[0].mxu0
        %v542 = vadd.f32 %v443, %v541
        %543 = vmatprep.mubr.f32.mxu0 0.0
        %544 = vmatmul.mubr.f32.gmra.mrb[0].mxu0 %v465
        %v545 = vpop.f32.mrb[0].mxu0
        %v546 = vadd.f32 %v448, %v545
        %v547 = vpop.f32.mrb[0].mxu0
        %v548 = vadd.f32 %v448, %v547
        %549 = vmatprep.mubr.f32.mxu0 0.0
        %550 = vmatmul.mubr.f32.gmra.mrb[0].mxu0 %v468
        %v551 = vpop.f32.mrb[0].mxu0
        %v552 = vadd.f32 %v453, %v551
        %v553 = vpop.f32.mrb[0].mxu0
        %v554 = vadd.f32 %v453, %v553
        %555 = vmatprep.mubr.f32.mxu0 0.0
        %556 = vmatmul.mubr.f32.gmra.mrb[0].mxu0 %v471
        %v557 = vpop.f32.mrb[0].mxu0
        %v558 = vadd.f32 %v458, %v557
        %v559 = vpop.f32.mrb[0].mxu0
        %v560 = vadd.f32 %v458, %v559
        %561 = vdwg.mxu0
        %v562 = vadd.f32 %v540, %v304
        %v563 = vadd.f32 %v542, %v305
        %v564 = vadd.f32 %v546, %v306
        %v565 = vadd.f32 %v548, %v307
        %v566 = vadd.f32 %v552, %v308
        %v567 = vadd.f32 %v554, %v309
        %v568 = vadd.f32 %v558, %v310
        %v569 = vadd.f32 %v560, %v311
        %v570 = vmax.f32 %v562, 0.0
        %v571 = vmax.f32 %v563, 0.0
        %v572 = vmax.f32 %v564, 0.0
        %v573 = vmax.f32 %v565, 0.0
        %v574 = vmax.f32 %v566, 0.0
        %v575 = vmax.f32 %v567, 0.0
        %v576 = vmax.f32 %v568, 0.0
        %v577 = vmax.f32 %v569, 0.0
        %v578 = vadd.f32 %v570, %v304
        %v579 = vadd.f32 %v571, %v305
        %v580 = vadd.f32 %v572, %v306
        %v581 = vadd.f32 %v573, %v307
        %v582 = vadd.f32 %v574, %v308
        %v583 = vadd.f32 %v575, %v309
        %v584 = vadd.f32 %v576, %v310
        %v585 = vadd.f32 %v577, %v311
        %v586 = vmax.f32 %v578, 0.0
        %v587 = vmax.f32 %v579, 0.0
        %v588 = vmax.f32 %v580, 0.0
        %v589 = vmax.f32 %v581, 0.0
        %v590 = vmax.f32 %v582, 0.0
        %v591 = vmax.f32 %v583, 0.0
        %v592 = vmax.f32 %v584, 0.0
        %v593 = vmax.f32 %v585, 0.0
        %594 = vst [vmem:[%s293] sm:$0xff] %v586
        %595 = vst [vmem:[%s293 + $0x8] sm:$0xff] %v587
        %596 = vst [vmem:[%s293 + $0x10] sm:$0xff] %v588
        %597 = vst [vmem:[%s293 + $0x18] sm:$0xff] %v589
        %598 = vst [vmem:[%s293 + $0x20] sm:$0xff] %v590
        %599 = vst [vmem:[%s293 + $0x28] sm:$0xff] %v591
        %600 = vst [vmem:[%s293 + $0x30] sm:$0xff] %v592
        %601 = vst [vmem:[%s293 + $0x38] sm:$0xff] %v593
        %v604 = vcombine.low %v419, %v421
        %v606 = vunpack.c.l.s4 1966171168
        %v607 = vunpack.c.0.s8 %v606
        %v608 = vlaneseq
        %v609 = vshrl.u32 %v608, 7
        %v610 = vsub.s32 %v607, %v609
        %v611 = vrot.slane %v604, %v610
        %v613 = vunpack.c.l.s4 1966171168
        %v614 = vunpack.c.0.s8 %v613
        %v615 = vlaneseq
        %v616 = vshrl.u32 %v615, 7
        %v617 = vsub.s32 %v614, %v616
        %v618 = vrot.slane %v611, %v617
        %v620 = vlaneseq
        %vm621 = vcmp.ge.s32.totalorder %v620, 0
        %vm622 = vcmp.lt.s32.totalorder %v620, 256
        %vm623 = vmand %vm621, %vm622
        %624 = vst.msk [vmem:[%s300] sm:$0x3] %vm623, %v618
        %s625 = sand.u32 %s161, 1
        %s626 = scalar_lea.sflag [#allocation4], %s625
        %s627 = sand.u32 %s161, 1
        %s628 = smul.addr %s627, 64
        %s629 = scalar_lea.vmem [#allocation5], %s628
        %s630 = sand.u32 %s189, 1
        %s631 = scalar_lea.sflag [#allocation7], %s630
        %s632 = sand.u32 %s189, 1
        %s633 = smul.addr %s632, 2
        %s634 = scalar_lea.vmem [#allocation6], %s633
        // Predicated region
        $region45: #{tpu_custom_call.1} parent=39 // pred_check
          %p635 = pneg %p171
        $region46: #{tpu_custom_call.1} parent=39 // pred_check_branch
          %637 = sbr.rel (%p635) target = $region48
        $region47: #{tpu_custom_call.1} parent=39 // pred_region
          %s638 = smul.u32 2, %s32
          %s640 = ssub.s32 1024, 1024
          %641 = vsyncadd %s626, %s640
          %s642 = smul.addr %s31, 8
          %s643 = sadd.s32 %s638, %s642
          %s644 = smul.addr %s643, 128
          %s645 = scalar_lea.hbm %s5, %s644
          %s646 = sshll.u32 %s629, 4
          %s647 = int_to_ptr.vmem [resolvable:$true] %s646
          %652 = dma.vmem_to_hbm [thread:$0]  %s647, 1024, %s645, %s626, 256, 256, 16
        $region48: #{tpu_custom_call.1} parent=39 // pred_fallthru
          _
        // Predicated region
        $region49: #{tpu_custom_call.1} parent=39 // pred_check
          %p653 = pneg %p199
        $region50: #{tpu_custom_call.1} parent=39 // pred_check_branch
          %655 = sbr.rel (%p653) target = $region52
        $region51: #{tpu_custom_call.1} parent=39 // pred_region
          %s656 = smul.u32 2, %s32
          %s658 = ssub.s32 32, 32
          %659 = vsyncadd %s631, %s658
          %s660 = smul.addr %s31, 2
          %s661 = sadd.s32 %s656, %s660
          %s662 = smul.addr %s661, 16
          %s663 = scalar_lea.hbm %s6, %s662
          %s665 = sshll.u32 %s634, 4
          %s666 = int_to_ptr.vmem [resolvable:$true] %s665
          %668 = dma.vmem_to_hbm [thread:$0]  %s666, 32, %s663, %s631
        $region52: #{tpu_custom_call.1} parent=39 // pred_fallthru
          _
      $region40: #{tpu_custom_call.1} parent=5 // pred_fallthru
        _
      %p669 = scmp.le.s32.totalorder 2, %s22
      // Predicated region
      $region53: #{tpu_custom_call.1} parent=5 // pred_check
        %p670 = pneg %p669
      $region54: #{tpu_custom_call.1} parent=5 // pred_check_branch
        %672 = sbr.rel (%p670) target = $region56
      $region55: #{tpu_custom_call.1} parent=5 // pred_region
        %s673 = ssub.s32 %s22, 2
        // Predicated region
        $region57: #{tpu_custom_call.1} parent=55 // pred_check
          %p674 = pneg %p177
        $region58: #{tpu_custom_call.1} parent=55 // pred_check_branch
          %676 = sbr.rel (%p674) target = $region60
        $region59: #{tpu_custom_call.1} parent=55 // pred_region
          %s677 = sand.u32 %s162, 1
          %s678 = scalar_lea.sflag [#allocation4], %s677
          %s679 = sand.u32 %s162, 1
          %s680 = smul.addr %s679, 64
          %s681 = scalar_lea.vmem [#allocation5], %s680
          %682 = dma.done %s678, 1024
        $region60: #{tpu_custom_call.1} parent=55 // pred_fallthru
          _
        // Predicated region
        $region61: #{tpu_custom_call.1} parent=55 // pred_check
          %p683 = pneg %p205
        $region62: #{tpu_custom_call.1} parent=55 // pred_check_branch
          %685 = sbr.rel (%p683) target = $region64
        $region63: #{tpu_custom_call.1} parent=55 // pred_region
          %s686 = sand.u32 %s190, 1
          %s687 = scalar_lea.sflag [#allocation7], %s686
          %s688 = sand.u32 %s190, 1
          %s689 = smul.addr %s688, 2
          %s690 = scalar_lea.vmem [#allocation6], %s689
          %691 = dma.done %s687, 32
        $region64: #{tpu_custom_call.1} parent=55 // pred_fallthru
          _
      $region56: #{tpu_custom_call.1} parent=5 // pred_fallthru
        _
    $region6: #{tpu_custom_call.1} parent=1 // loop_footer
      %s26 = sadd.s32 1, %s22
    $region7: #{tpu_custom_call.1} parent=1 // loop_footer_branch
      %21 = sbr.rel target = $region3
    $region8: #{tpu_custom_call.1} parent=1 // loop_exit
      _
    %692 = vsyncpa [#allocation3], 1
    %s693 = scalar_lea.sflag [#allocation3], 1
    %694 = vsyncpa %s693, 1
    %695 = vsyncpa [#allocation4], 1
    %s696 = scalar_lea.sflag [#allocation4], 1
    %697 = vsyncpa %s696, 1
    %698 = vsyncpa [#allocation7], 1
    %s699 = scalar_lea.sflag [#allocation7], 1
    %700 = vsyncpa %s699, 1

</llo_original>
